<compile_context>
chip_gen: v7x
topology: tpu7x:2x2x1
jax: 0.10.0
libtpu: 0.0.40
codegen_flags: <defaults>
</compile_context>

<pallas_src>
import functools
import math

import jax
import jax.numpy as jnp
from jax.experimental import pallas as pl
from jax.experimental.pallas import tpu as pltpu


def _round_up(x: int, m: int) -> int:
    return (x + m - 1) // m * m


def _pad_dim(d: int) -> int:
    # Pad moderate/large contraction/feature dims to a lane multiple; leave
    # tiny dims (<128) alone (full-extent blocks are legal and overhead-bound).
    if d >= 128 and d % 128 != 0:
        return _round_up(d, 128)
    return d


# --------------------------------------------------------------------------
# Kernel
# --------------------------------------------------------------------------
def _mlp_kernel(x_ref, w1_ref, b1_ref, w2_ref, b2_ref, w3_ref, b3_ref, o_ref):
    # Entire fused MLP hot path runs in VMEM on one batch tile.
    # MXU matmuls with f32 accumulation; bias+ReLU epilogue stays f32
    # (v5e has no bf16 VPU path).
    x = x_ref[...]

    h = jnp.dot(x, w1_ref[...], preferred_element_type=jnp.float32)
    h = jnp.maximum(h + b1_ref[...].astype(jnp.float32), 0.0)

    h = jnp.dot(h.astype(w2_ref.dtype), w2_ref[...],
                preferred_element_type=jnp.float32)
    h = jnp.maximum(h + b2_ref[...].astype(jnp.float32), 0.0)

    out = jnp.dot(h.astype(w3_ref.dtype), w3_ref[...],
                  preferred_element_type=jnp.float32)
    o_ref[...] = (out + b3_ref[...].astype(jnp.float32)).astype(o_ref.dtype)


def _probe_kernel(x_ref, o_ref):
    o_ref[...] = x_ref[...]


@functools.lru_cache(maxsize=1)
def _single_buffer_supported() -> bool:
    """Trace-only probe: can this build single-buffer grid-invariant blocks?

    Uses jit(...).lower(...) so no device kernel is executed.
    """
    try:
        spec = pl.BlockSpec((8, 128), lambda i: (0, 0),
                            pipeline_mode=pl.Buffered(buffer_count=1))
        fn = pl.pallas_call(
            _probe_kernel,
            out_shape=jax.ShapeDtypeStruct((16, 128), jnp.float32),
            grid=(2,),
            in_specs=[spec],
            out_specs=pl.BlockSpec((8, 128), lambda i: (i, 0)),
        )
        jax.jit(fn).lower(jax.ShapeDtypeStruct((8, 128), jnp.float32))
        return True
    except Exception:
        return False


def _const_spec(shape, single_buffer):
    # Grid-invariant block (weights / biases): same block every step; when
    # requested, drop the second pipeline buffer to halve VMEM residency.
    if single_buffer:
        return pl.BlockSpec(shape, lambda i: (0, 0),
                            pipeline_mode=pl.Buffered(buffer_count=1))
    return pl.BlockSpec(shape, lambda i: (0, 0))


# --------------------------------------------------------------------------
# Jitted wrapper (padding + pallas_call + output slice, single dispatch)
# --------------------------------------------------------------------------
def _pad2(a, rows, cols):
    r, c = a.shape
    if r == rows and c == cols:
        return a
    return jnp.pad(a, ((0, rows - r), (0, cols - c)))


@functools.partial(
    jax.jit,
    static_argnames=("tile", "single_buffer", "cast_weights_bf16",
                     "out_dtype", "vmem_limit"))
def _mlp_pallas(x, w1, b1, w2, b2, w3, b3, *, tile, single_buffer,
                cast_weights_bf16, out_dtype, vmem_limit):
    B, in_size = x.shape
    h1 = w1.shape[1]
    h2 = w2.shape[1]
    nc = w3.shape[1]

    in_p, h1_p, h2_p = _pad_dim(in_size), _pad_dim(h1), _pad_dim(h2)
    nc_p = _round_up(nc, 128)  # lane-dense output store

    # Zero-padding preserves semantics exactly: padded columns produce
    # relu(0 + 0) = 0 activations which contribute nothing downstream.
    x = _pad2(x, B, in_p)
    w1 = _pad2(w1, in_p, h1_p)
    b1 = _pad2(b1, 1, h1_p)
    w2 = _pad2(w2, h1_p, h2_p)
    b2 = _pad2(b2, 1, h2_p)
    w3 = _pad2(w3, h2_p, nc_p)
    b3 = _pad2(b3, 1, nc_p)

    if cast_weights_bf16:
        x = x.astype(jnp.bfloat16)
        w1, w2, w3 = (w.astype(jnp.bfloat16) for w in (w1, w2, w3))

    grid = (pl.cdiv(B, tile),)

    out = pl.pallas_call(
        _mlp_kernel,
        out_shape=jax.ShapeDtypeStruct((B, nc_p), out_dtype),
        grid=grid,
        in_specs=[
            pl.BlockSpec((tile, in_p), lambda i: (i, 0)),       # x tile
            _const_spec((in_p, h1_p), single_buffer),           # W1
            _const_spec((1, h1_p), single_buffer),              # b1
            _const_spec((h1_p, h2_p), single_buffer),           # W2
            _const_spec((1, h2_p), single_buffer),              # b2
            _const_spec((h2_p, nc_p), single_buffer),           # W3 (padded)
            _const_spec((1, nc_p), single_buffer),              # b3 (padded)
        ],
        out_specs=pl.BlockSpec((tile, nc_p), lambda i: (i, 0)),
        compiler_params=pltpu.CompilerParams(
            dimension_semantics=("parallel",),
            vmem_limit_bytes=vmem_limit,
        ),
    )(x, w1, b1, w2, b2, w3, b3)

    return out[:, :nc]


# --------------------------------------------------------------------------
# Public entry point
# --------------------------------------------------------------------------
def mlp_forward(x, w1, b1, w2, b2, w3, b3, *, batch_tile=512,
                out_dtype=jnp.float32, allow_bf16_weights=False):
    """y = relu(relu(x @ W1 + b1) @ W2 + b2) @ W3 + b3 (fused Pallas kernel)."""
    B, in_size = x.shape
    h1 = w1.shape[1]
    h2 = w2.shape[1]
    nc = w3.shape[1]

    in_p, h1_p, h2_p = _pad_dim(in_size), _pad_dim(h1), _pad_dim(h2)
    nc_p = _round_up(nc, 128)

    # Generation-aware per-core VMEM budget (~51 MiB v7x, ~102 MiB v5e/v6e).
    try:
        vmem_cap = int(pltpu.get_tpu_info().vmem_capacity_bytes)
    except Exception:
        vmem_cap = 128 << 20
    budget = int(vmem_cap * 0.8)

    # Resident weight/bias bytes (padded).
    w_itemsize = jnp.dtype(w1.dtype).itemsize
    b_itemsize = jnp.dtype(b1.dtype).itemsize
    wbytes = (in_p * h1_p + h1_p * h2_p + h2_p * nc_p) * w_itemsize
    wbytes += (h1_p + h2_p + nc_p) * b_itemsize

    # Only bother with single-buffering when weights are a significant
    # fraction of VMEM (probe is trace-only, no device execution).
    single_buffer = False
    buf = 2
    if 2 * wbytes > budget // 2 and _single_buffer_supported():
        single_buffer = True
        buf = 1

    # bf16 fallback: halve weight residency/HBM traffic when f32 weights would
    # blow the per-core budget (f32 accumulation kept in the kernel).
    cast_bf16 = bool(allow_bf16_weights) and w_itemsize == 4
    if w_itemsize == 4 and buf * wbytes > int(0.6 * budget):
        cast_bf16 = True
    wbytes_eff = wbytes // 2 if cast_bf16 else wbytes
    # TODO(synk): add a feature-dim (N) grid axis for weight sets that exceed
    # per-core VMEM even in bf16 (e.g. very large layers on v7x's 64 MiB).

    x_itemsize = 2 if cast_bf16 else jnp.dtype(x.dtype).itemsize
    out_itemsize = jnp.dtype(out_dtype).itemsize
    sublane = 8 if x_itemsize == 4 else (16 if x_itemsize == 2 else 32)

    # Per-batch-row VMEM cost: double-buffered x/out tiles + f32 intermediates.
    row_bytes = (2 * in_p * x_itemsize
                 + 2 * nc_p * out_itemsize
                 + 4 * (h1_p + h2_p + nc_p))

    avail = budget - buf * wbytes_eff - (4 << 20)
    max_rows = max(sublane, avail // row_bytes) if avail > 0 else sublane

    # Batch tile: as large as the budget/batch allow, multiple of 128 when big.
    tile = max(int(batch_tile), sublane)
    tile = min(tile, int(max_rows), _round_up(B, sublane))
    if tile >= 128:
        tile = (tile // 128) * 128
    else:
        tile = _round_up(tile, sublane)
    # Guarantee >= 2 grid steps when there is enough work, so v7x's two
    # TensorCores both get a share of the "parallel" batch axis.
    while pl.cdiv(B, tile) < 2 and tile >= 2 * 128:
        tile //= 2

    need = buf * wbytes_eff + tile * row_bytes
    vmem_limit = int(min(budget, max(16 << 20, int(need * 1.25) + (2 << 20))))

    return _mlp_pallas(x, w1, b1, w2, b2, w3, b3,
                       tile=int(tile),
                       single_buffer=single_buffer,
                       cast_weights_bf16=cast_bf16,
                       out_dtype=jnp.dtype(out_dtype),
                       vmem_limit=vmem_limit)


def _init_linear(key, fan_in, fan_out, dtype=jnp.float32):
    # Mimic PyTorch's default nn.Linear init: U(-1/sqrt(fan_in), 1/sqrt(fan_in)).
    kw, kb = jax.random.split(key)
    bound = 1.0 / math.sqrt(fan_in)
    w = jax.random.uniform(kw, (fan_in, fan_out), dtype, -bound, bound)
    b = jax.random.uniform(kb, (1, fan_out), dtype, -bound, bound)
    return w, b


if __name__ == "__main__":
    # Small shapes consistent with the module's forward (fully generic MLP).
    batch = 8
    in_size = 32
    h1_size = 32
    h2_size = 32
    num_classes = 16

    key = jax.random.PRNGKey(0)
    kx, k1, k2, k3 = jax.random.split(key, 4)

    x = jax.random.normal(kx, (batch, in_size), jnp.float32)
    w1, b1 = _init_linear(k1, in_size, h1_size)
    w2, b2 = _init_linear(k2, h1_size, h2_size)
    w3, b3 = _init_linear(k3, h2_size, num_classes)

    def ref_fn(x, w1, b1, w2, b2, w3, b3):
        h = jnp.maximum(x @ w1 + b1, 0.0)
        h = jnp.maximum(h @ w2 + b2, 0.0)
        return h @ w3 + b3

    # f32 path (strict check).
    out = jax.block_until_ready(mlp_forward(x, w1, b1, w2, b2, w3, b3))
    ref = ref_fn(x, w1, b1, w2, b2, w3, b3)
    assert out.shape == (batch, num_classes)
    assert jnp.allclose(out, ref, atol=1e-5, rtol=1e-5)

    # Larger, non-multiple batch exercising the ragged-last-block path
    # (no wrapper-side batch pad) and the >=2-grid-step tiling.
    xb = jax.random.normal(jax.random.PRNGKey(1), (200, in_size), jnp.float32)
    out_b = jax.block_until_ready(mlp_forward(xb, w1, b1, w2, b2, w3, b3))
    ref_b = ref_fn(xb, w1, b1, w2, b2, w3, b3)
    assert out_b.shape == (200, num_classes)
    assert jnp.allclose(out_b, ref_b, atol=1e-5, rtol=1e-5)

    # bf16 weights/inputs (v6e/v7x-friendly), f32 accumulation + f32 output.
    out_bf = jax.block_until_ready(
        mlp_forward(x.astype(jnp.bfloat16),
                    w1.astype(jnp.bfloat16), b1,
                    w2.astype(jnp.bfloat16), b2,
                    w3.astype(jnp.bfloat16), b3))
    assert out_bf.shape == (batch, num_classes)
    assert jnp.allclose(out_bf, ref, atol=5e-2, rtol=5e-2)

    print("KERNEL_OK")
</pallas_src>

<mosaic_0001>
module attributes {stable_mosaic.version = 11 : i64} {
  func.func @_mlp_kernel(%arg0: i32, %arg1: memref<8x32xf32, #tpu.memory_space<vmem>>, %arg2: memref<32x32xf32, #tpu.memory_space<vmem>>, %arg3: memref<1x32xf32, #tpu.memory_space<vmem>>, %arg4: memref<32x32xf32, #tpu.memory_space<vmem>>, %arg5: memref<1x32xf32, #tpu.memory_space<vmem>>, %arg6: memref<32x128xf32, #tpu.memory_space<vmem>>, %arg7: memref<1x128xf32, #tpu.memory_space<vmem>>, %arg8: memref<8x128xf32, #tpu.memory_space<vmem>>) attributes {dimension_semantics = [#tpu.dimension_semantics<parallel>], iteration_bounds = array<i64: 1>, scalar_prefetch = 0 : i64, scratch_operands = 0 : i64, tpu.core_type = #tpu.core_type<tc>, window_params = [{transform_indices = @transform_0, window_bounds = array<i64: 8, 32>}, {pipeline_mode = #tpu.pipeline_mode<synchronous>, transform_indices = @transform_1, window_bounds = array<i64: 32, 32>}, {pipeline_mode = #tpu.pipeline_mode<synchronous>, transform_indices = @transform_2, window_bounds = array<i64: 1, 32>}, {pipeline_mode = #tpu.pipeline_mode<synchronous>, transform_indices = @transform_3, window_bounds = array<i64: 32, 32>}, {pipeline_mode = #tpu.pipeline_mode<synchronous>, transform_indices = @transform_4, window_bounds = array<i64: 1, 32>}, {pipeline_mode = #tpu.pipeline_mode<synchronous>, transform_indices = @transform_5, window_bounds = array<i64: 32, 128>}, {pipeline_mode = #tpu.pipeline_mode<synchronous>, transform_indices = @transform_6, window_bounds = array<i64: 1, 128>}, {transform_indices = @transform_7, window_bounds = array<i64: 8, 128>}]} {
    %c0 = arith.constant 0 : index
    %c0_0 = arith.constant 0 : index
    %0 = vector.load %arg1[%c0, %c0_0] : memref<8x32xf32, #tpu.memory_space<vmem>>, vector<8x32xf32>
    %c0_1 = arith.constant 0 : index
    %c0_2 = arith.constant 0 : index
    %1 = vector.load %arg2[%c0_1, %c0_2] : memref<32x32xf32, #tpu.memory_space<vmem>>, vector<32x32xf32>
    %cst = arith.constant dense<0.000000e+00> : vector<8x32xf32>
    %2 = tpu.matmul %0, %1, %cst {dimension_numbers = #tpu.dot_dimension_numbers<[1], [0], [0], [1], [0, 0, 1, 1], [], []>} : vector<8x32xf32>, vector<32x32xf32>, vector<8x32xf32> -> vector<8x32xf32>
    %c0_3 = arith.constant 0 : index
    %c0_4 = arith.constant 0 : index
    %3 = vector.load %arg3[%c0_3, %c0_4] : memref<1x32xf32, #tpu.memory_space<vmem>>, vector<1x32xf32>
    %4 = vector.broadcast %3 : vector<1x32xf32> to vector<8x32xf32>
    %5 = arith.addf %2, %4 : vector<8x32xf32>
    %cst_5 = arith.constant 0.000000e+00 : f32
    %6 = vector.broadcast %cst_5 : f32 to vector<8x32xf32>
    %7 = arith.maximumf %5, %6 : vector<8x32xf32>
    %c0_6 = arith.constant 0 : index
    %c0_7 = arith.constant 0 : index
    %8 = vector.load %arg4[%c0_6, %c0_7] : memref<32x32xf32, #tpu.memory_space<vmem>>, vector<32x32xf32>
    %cst_8 = arith.constant dense<0.000000e+00> : vector<8x32xf32>
    %9 = tpu.matmul %7, %8, %cst_8 {dimension_numbers = #tpu.dot_dimension_numbers<[1], [0], [0], [1], [0, 0, 1, 1], [], []>} : vector<8x32xf32>, vector<32x32xf32>, vector<8x32xf32> -> vector<8x32xf32>
    %c0_9 = arith.constant 0 : index
    %c0_10 = arith.constant 0 : index
    %10 = vector.load %arg5[%c0_9, %c0_10] : memref<1x32xf32, #tpu.memory_space<vmem>>, vector<1x32xf32>
    %11 = vector.broadcast %10 : vector<1x32xf32> to vector<8x32xf32>
    %12 = arith.addf %9, %11 : vector<8x32xf32>
    %cst_11 = arith.constant 0.000000e+00 : f32
    %13 = vector.broadcast %cst_11 : f32 to vector<8x32xf32>
    %14 = arith.maximumf %12, %13 : vector<8x32xf32>
    %c0_12 = arith.constant 0 : index
    %c0_13 = arith.constant 0 : index
    %15 = vector.load %arg6[%c0_12, %c0_13] : memref<32x128xf32, #tpu.memory_space<vmem>>, vector<32x128xf32>
    %cst_14 = arith.constant dense<0.000000e+00> : vector<8x128xf32>
    %16 = tpu.matmul %14, %15, %cst_14 {dimension_numbers = #tpu.dot_dimension_numbers<[1], [0], [0], [1], [0, 0, 1, 1], [], []>} : vector<8x32xf32>, vector<32x128xf32>, vector<8x128xf32> -> vector<8x128xf32>
    %c0_15 = arith.constant 0 : index
    %c0_16 = arith.constant 0 : index
    %17 = vector.load %arg7[%c0_15, %c0_16] : memref<1x128xf32, #tpu.memory_space<vmem>>, vector<1x128xf32>
    %18 = vector.broadcast %17 : vector<1x128xf32> to vector<8x128xf32>
    %19 = arith.addf %16, %18 : vector<8x128xf32>
    %c0_17 = arith.constant 0 : index
    %c0_18 = arith.constant 0 : index
    %20 = vector.load %arg8[%c0_17, %c0_18] : memref<8x128xf32, #tpu.memory_space<vmem>>, vector<8x128xf32>
    tpu.vector_store %arg8[%c0_17, %c0_18], %19 {strides = array<i32>} : memref<8x128xf32, #tpu.memory_space<vmem>>, vector<8x128xf32>,
    return
  }
  func.func @transform_0(%arg0: i32) -> (i32, i32) {
    %c0_i32 = arith.constant 0 : i32
    %c0_i32_0 = arith.constant 0 : i32
    return %arg0, %c0_i32 : i32, i32
  }
  func.func @transform_1(%arg0: i32) -> (i32, i32) {
    %c0_i32 = arith.constant 0 : i32
    %c0_i32_0 = arith.constant 0 : i32
    %c0_i32_1 = arith.constant 0 : i32
    return %c0_i32, %c0_i32_0 : i32, i32
  }
  func.func @transform_2(%arg0: i32) -> (i32, i32) {
    %c0_i32 = arith.constant 0 : i32
    %c0_i32_0 = arith.constant 0 : i32
    %c0_i32_1 = arith.constant 0 : i32
    return %c0_i32, %c0_i32_0 : i32, i32
  }
  func.func @transform_3(%arg0: i32) -> (i32, i32) {
    %c0_i32 = arith.constant 0 : i32
    %c0_i32_0 = arith.constant 0 : i32
    %c0_i32_1 = arith.constant 0 : i32
    return %c0_i32, %c0_i32_0 : i32, i32
  }
  func.func @transform_4(%arg0: i32) -> (i32, i32) {
    %c0_i32 = arith.constant 0 : i32
    %c0_i32_0 = arith.constant 0 : i32
    %c0_i32_1 = arith.constant 0 : i32
    return %c0_i32, %c0_i32_0 : i32, i32
  }
  func.func @transform_5(%arg0: i32) -> (i32, i32) {
    %c0_i32 = arith.constant 0 : i32
    %c0_i32_0 = arith.constant 0 : i32
    %c0_i32_1 = arith.constant 0 : i32
    return %c0_i32, %c0_i32_0 : i32, i32
  }
  func.func @transform_6(%arg0: i32) -> (i32, i32) {
    %c0_i32 = arith.constant 0 : i32
    %c0_i32_0 = arith.constant 0 : i32
    %c0_i32_1 = arith.constant 0 : i32
    return %c0_i32, %c0_i32_0 : i32, i32
  }
  func.func @transform_7(%arg0: i32) -> (i32, i32) {
    %c0_i32 = arith.constant 0 : i32
    %c0_i32_0 = arith.constant 0 : i32
    return %arg0, %c0_i32 : i32, i32
  }
}

</mosaic_0001>

<llo_original>
// kernel: _mlp_pallas.1
$region0: #{_mlp_pallas.1}
  #allocation0 [shape = 'u32[]', space=smem, size = 0x4, offset = 0x4, fixed_abs, tag = 'smem constant byte address 0x4 - core index']
  #allocation1 [shape = 'u32[144,128]{1,0:T(1,128)}', space=vmem, size = 0x12000, scoped, tag = 'internal scratch']
  %s0 = inlined_call_operand.vmem [shape: f32[8,32], index: 0, kind: input, shape index: {}]
  %s1 = inlined_call_operand.vmem [shape: f32[32,32], index: 1, kind: input, shape index: {}]
  %s2 = inlined_call_operand.vmem [shape: f32[1,32], index: 2, kind: input, shape index: {}]
  %s3 = inlined_call_operand.vmem [shape: f32[32,32], index: 3, kind: input, shape index: {}]
  %s4 = inlined_call_operand.vmem [shape: f32[1,32], index: 4, kind: input, shape index: {}]
  %s5 = inlined_call_operand.vmem [shape: f32[32,128], index: 5, kind: input, shape index: {}]
  %s6 = inlined_call_operand.vmem [shape: f32[1,128], index: 6, kind: input, shape index: {}]
  %s7 = inlined_call_operand.hbm [shape: f32[8,128], index: 7, kind: output, shape index: {}]
  %s8 = sld [smem:[#allocation0]]
  $region38: #{_mlp_pallas.1} parent=0
    _
  %s10 = ssub.s32 1, %s8
  %s11 = scalar_select 0, %s10, %s8
  $region1: #{_mlp_pallas.1} parent=0
    #allocation2 [shape = 'u8[4096]{0}', space=vmem, size = 0x1000, scoped, tag = 'output window, operand 0, single buffered']
    #allocation3 [shape = 's32[1]{0}', space=sflag, size = 0x4, scoped, tag = 'scoped memory for _mlp_pallas.1']
    %12 = vsyncpa [#allocation3], 0
    // Predicated region
    $region2: #{_mlp_pallas.1} parent=1 // pred_check
      _
    $region3: #{_mlp_pallas.1} parent=1 // pred_check_branch
      %14 = sbr.rel (0) target = $region5
    $region4: #{_mlp_pallas.1} parent=1 // pred_region
      _
    $region5: #{_mlp_pallas.1} parent=1 // pred_fallthru
      _
    // Predicated region
    $region6: #{_mlp_pallas.1} parent=1 // pred_check
      _
    $region7: #{_mlp_pallas.1} parent=1 // pred_check_branch
      %16 = sbr.rel (0) target = $region9
    $region8: #{_mlp_pallas.1} parent=1 // pred_region
      _
    $region9: #{_mlp_pallas.1} parent=1 // pred_fallthru
      _
    // Predicated region
    $region10: #{_mlp_pallas.1} parent=1 // pred_check
      _
    $region11: #{_mlp_pallas.1} parent=1 // pred_check_branch
      %18 = sbr.rel (0) target = $region13
    $region12: #{_mlp_pallas.1} parent=1 // pred_region
      _
    $region13: #{_mlp_pallas.1} parent=1 // pred_fallthru
      _
    // Predicated region
    $region14: #{_mlp_pallas.1} parent=1 // pred_check
      _
    $region15: #{_mlp_pallas.1} parent=1 // pred_check_branch
      %20 = sbr.rel (0) target = $region17
    $region16: #{_mlp_pallas.1} parent=1 // pred_region
      _
    $region17: #{_mlp_pallas.1} parent=1 // pred_fallthru
      _
    // Predicated region
    $region18: #{_mlp_pallas.1} parent=1 // pred_check
      _
    $region19: #{_mlp_pallas.1} parent=1 // pred_check_branch
      %22 = sbr.rel (0) target = $region21
    $region20: #{_mlp_pallas.1} parent=1 // pred_region
      _
    $region21: #{_mlp_pallas.1} parent=1 // pred_fallthru
      _
    // Predicated region
    $region22: #{_mlp_pallas.1} parent=1 // pred_check
      _
    $region23: #{_mlp_pallas.1} parent=1 // pred_check_branch
      %24 = sbr.rel (0) target = $region25
    $region24: #{_mlp_pallas.1} parent=1 // pred_region
      _
    $region25: #{_mlp_pallas.1} parent=1 // pred_fallthru
      _
    // Predicated region
    $region26: #{_mlp_pallas.1} parent=1 // pred_check
      _
    $region27: #{_mlp_pallas.1} parent=1 // pred_check_branch
      %26 = sbr.rel (0) target = $region29
    $region28: #{_mlp_pallas.1} parent=1 // pred_region
      _
    $region29: #{_mlp_pallas.1} parent=1 // pred_fallthru
      _
    %v27 = vld [vmem:[%s0] sm:$0xff]
    %v28 = vld [vmem:[%s1] sm:$0xff]
    %v29 = vld [vmem:[%s1 + $0x8] sm:$0xff]
    %v30 = vld [vmem:[%s1 + $0x10] sm:$0xff]
    %v31 = vld [vmem:[%s1 + $0x18] sm:$0xff]
    %v32 = vld [vmem:[%s2] sm:$0x1]
    %v34 = vlaneseq
    %v35 = vshrl.u32 %v34, 7
    %v36 = vsub.s32 0, %v35
    %v37 = vrot.slane %v32, %v36
    %vm39 = vcmask 261120
    %v41 = vsel %vm39, %v27, 0
    %43 = vmatprep.subr.mxu0 0.0
    %44 = vmatpush1.msra.mxu0 %v28
    %45 = vmatprep.subr.mxu0 0.0
    %46 = vmatpush1.msra.mxu0 %v29
    %47 = vmatprep.subr.mxu0 0.0
    %48 = vmatpush1.msra.mxu0 %v30
    %49 = vmatprep.subr.mxu0 0.0
    %50 = vmatpush1.msra.mxu0 %v31
    %51 = vmatprep.subr.mxu0 0.0
    %52 = vmatpush1.msra.mxu0 0.0
    %53 = vmatprep.subr.mxu0 0.0
    %54 = vmatpush1.msra.mxu0 0.0
    %55 = vmatprep.subr.mxu0 0.0
    %56 = vmatpush1.msra.mxu0 0.0
    %57 = vmatprep.subr.mxu0 0.0
    %58 = vmatpush1.msra.mxu0 0.0
    %59 = vmatprep.subr.mxu0 0.0
    %60 = vmatpush1.msra.mxu0 0.0
    %61 = vmatprep.subr.mxu0 0.0
    %62 = vmatpush1.msra.mxu0 0.0
    %63 = vmatprep.subr.mxu0 0.0
    %64 = vmatpush1.msra.mxu0 0.0
    %65 = vmatprep.subr.mxu0 0.0
    %66 = vmatpush1.msra.mxu0 0.0
    %67 = vmatprep.subr.mxu0 0.0
    %68 = vmatpush1.msra.mxu0 0.0
    %69 = vmatprep.subr.mxu0 0.0
    %70 = vmatpush1.msra.mxu0 0.0
    %71 = vmatprep.subr.mxu0 0.0
    %72 = vmatpush1.msra.mxu0 0.0
    %73 = vmatprep.subr.mxu0 0.0
    %74 = vmatpush1.msra.mxu0 0.0
    %75 = vmatprep.subr.mxu0 0.0
    %76 = vmatpush1.msra.mxu0 0.0
    %77 = vmatprep.subr.mxu0 0.0
    %78 = vmatpush1.msra.mxu0 0.0
    %79 = vmatprep.subr.mxu0 0.0
    %80 = vmatpush1.msra.mxu0 0.0
    %81 = vmatprep.subr.mxu0 0.0
    %82 = vmatpush1.msra.mxu0 0.0
    %83 = vmatprep.subr.mxu0 0.0
    %84 = vmatpush1.msra.mxu0 0.0
    %85 = vmatprep.subr.mxu0 0.0
    %86 = vmatpush1.msra.mxu0 0.0
    %87 = vmatprep.subr.mxu0 0.0
    %88 = vmatpush1.msra.mxu0 0.0
    %89 = vmatprep.subr.mxu0 0.0
    %90 = vmatpush1.msra.mxu0 0.0
    %91 = vmatprep.subr.mxu0 0.0
    %92 = vmatpush1.msra.mxu0 0.0
    %93 = vmatprep.subr.mxu0 0.0
    %94 = vmatpush1.msra.mxu0 0.0
    %95 = vmatprep.subr.mxu0 0.0
    %96 = vmatpush1.msra.mxu0 0.0
    %97 = vmatprep.subr.mxu0 0.0
    %98 = vmatpush1.msra.mxu0 0.0
    %99 = vmatprep.subr.mxu0 0.0
    %100 = vmatpush1.msra.mxu0 0.0
    %101 = vmatprep.subr.mxu0 0.0
    %102 = vmatpush1.msra.mxu0 0.0
    %103 = vmatprep.subr.mxu0 0.0
    %104 = vmatpush1.msra.mxu0 0.0
    %105 = vmatprep.subr.mxu0 0.0
    %106 = vmatpush1.msra.mxu0 0.0
    %107 = vmatprep.mubr.f32.mxu0 0.0
    %108 = vmatmul.mubr.f32.gmra.mrb[0].mxu0 %v41
    %v109 = vpop.f32.mrb[0].mxu0
    %v110 = vadd.f32 %v37, %v109
    %v111 = vpop.f32.mrb[0].mxu0
    %112 = vdwg.mxu0
    %v113 = vmax.f32 %v110, 0.0
    %v114 = vld [vmem:[%s3] sm:$0xff]
    %v115 = vld [vmem:[%s3 + $0x8] sm:$0xff]
    %v116 = vld [vmem:[%s3 + $0x10] sm:$0xff]
    %v117 = vld [vmem:[%s3 + $0x18] sm:$0xff]
    %v118 = vld [vmem:[%s4] sm:$0x1]
    %v120 = vlaneseq
    %v121 = vshrl.u32 %v120, 7
    %v122 = vsub.s32 0, %v121
    %v123 = vrot.slane %v118, %v122
    %v126 = vsel %vm39, %v113, 0
    %128 = vmatprep.subr.mxu0 0.0
    %129 = vmatpush1.msra.mxu0 %v114
    %130 = vmatprep.subr.mxu0 0.0
    %131 = vmatpush1.msra.mxu0 %v115
    %132 = vmatprep.subr.mxu0 0.0
    %133 = vmatpush1.msra.mxu0 %v116
    %134 = vmatprep.subr.mxu0 0.0
    %135 = vmatpush1.msra.mxu0 %v117
    %136 = vmatprep.subr.mxu0 0.0
    %137 = vmatpush1.msra.mxu0 0.0
    %138 = vmatprep.subr.mxu0 0.0
    %139 = vmatpush1.msra.mxu0 0.0
    %140 = vmatprep.subr.mxu0 0.0
    %141 = vmatpush1.msra.mxu0 0.0
    %142 = vmatprep.subr.mxu0 0.0
    %143 = vmatpush1.msra.mxu0 0.0
    %144 = vmatprep.subr.mxu0 0.0
    %145 = vmatpush1.msra.mxu0 0.0
    %146 = vmatprep.subr.mxu0 0.0
    %147 = vmatpush1.msra.mxu0 0.0
    %148 = vmatprep.subr.mxu0 0.0
    %149 = vmatpush1.msra.mxu0 0.0
    %150 = vmatprep.subr.mxu0 0.0
    %151 = vmatpush1.msra.mxu0 0.0
    %152 = vmatprep.subr.mxu0 0.0
    %153 = vmatpush1.msra.mxu0 0.0
    %154 = vmatprep.subr.mxu0 0.0
    %155 = vmatpush1.msra.mxu0 0.0
    %156 = vmatprep.subr.mxu0 0.0
    %157 = vmatpush1.msra.mxu0 0.0
    %158 = vmatprep.subr.mxu0 0.0
    %159 = vmatpush1.msra.mxu0 0.0
    %160 = vmatprep.subr.mxu0 0.0
    %161 = vmatpush1.msra.mxu0 0.0
    %162 = vmatprep.subr.mxu0 0.0
    %163 = vmatpush1.msra.mxu0 0.0
    %164 = vmatprep.subr.mxu0 0.0
    %165 = vmatpush1.msra.mxu0 0.0
    %166 = vmatprep.subr.mxu0 0.0
    %167 = vmatpush1.msra.mxu0 0.0
    %168 = vmatprep.subr.mxu0 0.0
    %169 = vmatpush1.msra.mxu0 0.0
    %170 = vmatprep.subr.mxu0 0.0
    %171 = vmatpush1.msra.mxu0 0.0
    %172 = vmatprep.subr.mxu0 0.0
    %173 = vmatpush1.msra.mxu0 0.0
    %174 = vmatprep.subr.mxu0 0.0
    %175 = vmatpush1.msra.mxu0 0.0
    %176 = vmatprep.subr.mxu0 0.0
    %177 = vmatpush1.msra.mxu0 0.0
    %178 = vmatprep.subr.mxu0 0.0
    %179 = vmatpush1.msra.mxu0 0.0
    %180 = vmatprep.subr.mxu0 0.0
    %181 = vmatpush1.msra.mxu0 0.0
    %182 = vmatprep.subr.mxu0 0.0
    %183 = vmatpush1.msra.mxu0 0.0
    %184 = vmatprep.subr.mxu0 0.0
    %185 = vmatpush1.msra.mxu0 0.0
    %186 = vmatprep.subr.mxu0 0.0
    %187 = vmatpush1.msra.mxu0 0.0
    %188 = vmatprep.subr.mxu0 0.0
    %189 = vmatpush1.msra.mxu0 0.0
    %190 = vmatprep.subr.mxu0 0.0
    %191 = vmatpush1.msra.mxu0 0.0
    %192 = vmatprep.mubr.f32.mxu0 0.0
    %193 = vmatmul.mubr.f32.gmra.mrb[0].mxu0 %v126
    %v194 = vpop.f32.mrb[0].mxu0
    %v195 = vadd.f32 %v123, %v194
    %v196 = vpop.f32.mrb[0].mxu0
    %197 = vdwg.mxu0
    %v198 = vmax.f32 %v195, 0.0
    %v199 = vld [vmem:[%s5] sm:$0xff]
    %v200 = vld [vmem:[%s5 + $0x8] sm:$0xff]
    %v201 = vld [vmem:[%s5 + $0x10] sm:$0xff]
    %v202 = vld [vmem:[%s5 + $0x18] sm:$0xff]
    %v203 = vld [vmem:[%s6] sm:$0x1]
    %v205 = vlaneseq
    %v206 = vshrl.u32 %v205, 7
    %v207 = vsub.s32 0, %v206
    %v208 = vrot.slane %v203, %v207
    %v211 = vsel %vm39, %v198, 0
    %213 = vmatprep.subr.mxu0 0.0
    %214 = vmatpush1.msra.mxu0 %v199
    %215 = vmatprep.subr.mxu0 0.0
    %216 = vmatpush1.msra.mxu0 %v200
    %217 = vmatprep.subr.mxu0 0.0
    %218 = vmatpush1.msra.mxu0 %v201
    %219 = vmatprep.subr.mxu0 0.0
    %220 = vmatpush1.msra.mxu0 %v202
    %221 = vmatprep.subr.mxu0 0.0
    %222 = vmatpush1.msra.mxu0 0.0
    %223 = vmatprep.subr.mxu0 0.0
    %224 = vmatpush1.msra.mxu0 0.0
    %225 = vmatprep.subr.mxu0 0.0
    %226 = vmatpush1.msra.mxu0 0.0
    %227 = vmatprep.subr.mxu0 0.0
    %228 = vmatpush1.msra.mxu0 0.0
    %229 = vmatprep.subr.mxu0 0.0
    %230 = vmatpush1.msra.mxu0 0.0
    %231 = vmatprep.subr.mxu0 0.0
    %232 = vmatpush1.msra.mxu0 0.0
    %233 = vmatprep.subr.mxu0 0.0
    %234 = vmatpush1.msra.mxu0 0.0
    %235 = vmatprep.subr.mxu0 0.0
    %236 = vmatpush1.msra.mxu0 0.0
    %237 = vmatprep.subr.mxu0 0.0
    %238 = vmatpush1.msra.mxu0 0.0
    %239 = vmatprep.subr.mxu0 0.0
    %240 = vmatpush1.msra.mxu0 0.0
    %241 = vmatprep.subr.mxu0 0.0
    %242 = vmatpush1.msra.mxu0 0.0
    %243 = vmatprep.subr.mxu0 0.0
    %244 = vmatpush1.msra.mxu0 0.0
    %245 = vmatprep.subr.mxu0 0.0
    %246 = vmatpush1.msra.mxu0 0.0
    %247 = vmatprep.subr.mxu0 0.0
    %248 = vmatpush1.msra.mxu0 0.0
    %249 = vmatprep.subr.mxu0 0.0
    %250 = vmatpush1.msra.mxu0 0.0
    %251 = vmatprep.subr.mxu0 0.0
    %252 = vmatpush1.msra.mxu0 0.0
    %253 = vmatprep.subr.mxu0 0.0
    %254 = vmatpush1.msra.mxu0 0.0
    %255 = vmatprep.subr.mxu0 0.0
    %256 = vmatpush1.msra.mxu0 0.0
    %257 = vmatprep.subr.mxu0 0.0
    %258 = vmatpush1.msra.mxu0 0.0
    %259 = vmatprep.subr.mxu0 0.0
    %260 = vmatpush1.msra.mxu0 0.0
    %261 = vmatprep.subr.mxu0 0.0
    %262 = vmatpush1.msra.mxu0 0.0
    %263 = vmatprep.subr.mxu0 0.0
    %264 = vmatpush1.msra.mxu0 0.0
    %265 = vmatprep.subr.mxu0 0.0
    %266 = vmatpush1.msra.mxu0 0.0
    %267 = vmatprep.subr.mxu0 0.0
    %268 = vmatpush1.msra.mxu0 0.0
    %269 = vmatprep.subr.mxu0 0.0
    %270 = vmatpush1.msra.mxu0 0.0
    %271 = vmatprep.subr.mxu0 0.0
    %272 = vmatpush1.msra.mxu0 0.0
    %273 = vmatprep.subr.mxu0 0.0
    %274 = vmatpush1.msra.mxu0 0.0
    %275 = vmatprep.subr.mxu0 0.0
    %276 = vmatpush1.msra.mxu0 0.0
    %277 = vmatprep.mubr.f32.mxu0 0.0
    %278 = vmatmul.mubr.f32.gmra.mrb[0].mxu0 %v211
    %v279 = vpop.f32.mrb[0].mxu0
    %v280 = vadd.f32 %v208, %v279
    %v281 = vpop.f32.mrb[0].mxu0
    %282 = vdwg.mxu0
    %283 = vst [vmem:[#allocation2] sm:$0xff] %v280
    // Predicated region
    $region30: #{_mlp_pallas.1} parent=1 // pred_check
      _
    $region31: #{_mlp_pallas.1} parent=1 // pred_check_branch
      %285 = sbr.rel (0) target = $region33
    $region32: #{_mlp_pallas.1} parent=1 // pred_region
      %s287 = ssub.s32 128, 128
      %288 = vsyncadd [#allocation3], %s287
      %s290 = sshll.u32 [#allocation2], 4
      %s291 = int_to_ptr.vmem [resolvable:$true] %s290
      %293 = dma.vmem_to_hbm [thread:$0]  %s291, 128, %s7, [#allocation3]
    $region33: #{_mlp_pallas.1} parent=1 // pred_fallthru
      _
    // Predicated region
    $region34: #{_mlp_pallas.1} parent=1 // pred_check
      _
    $region35: #{_mlp_pallas.1} parent=1 // pred_check_branch
      %295 = sbr.rel (0) target = $region37
    $region36: #{_mlp_pallas.1} parent=1 // pred_region
      %296 = dma.done [#allocation3], 128
    $region37: #{_mlp_pallas.1} parent=1 // pred_fallthru
      _
    %297 = vsyncpa [#allocation3], 1

</llo_original>
